<compile_context>
chip_gen: v7x
topology: tpu7x:2x2x1
jax: 0.10.0
libtpu: 0.0.40
codegen_flags: <defaults>
</compile_context>

<pallas_src>
import jax
import jax.numpy as jnp
from jax.experimental import pallas as pl
from jax.experimental.pallas import tpu as pltpu


def xnet_kernel(params_ref, x_ref, o_ref):
    """params_ref: SMEM (26,) f32; x_ref: VMEM (3, TB) f32; o_ref: VMEM (1, TB) f32."""
    x0 = x_ref[0:1, :]   # (1, TB)
    x1 = x_ref[1:2, :]
    x2 = x_ref[2:3, :]

    y = None
    for j in range(5):                        # unrolled: 5 hidden units, 20 FMAs total
        h = (params_ref[j] * x0               # W1[0, j]
             + params_ref[5 + j] * x1         # W1[1, j]
             + params_ref[10 + j] * x2        # W1[2, j]
             + params_ref[15 + j])            # b1[j]
        h = jnp.maximum(h, 0.0)               # ReLU
        term = params_ref[20 + j] * h         # W2[j]
        y = term if y is None else y + term
    y = y + params_ref[25]                    # b2
    o_ref[...] = y.astype(o_ref.dtype)


def pack_params(w1, b1, w2, b2):
    """w1:(3,5) (in,out), b1:(5,), w2:(5,1), b2:(1,)  ->  flat (26,) f32 for SMEM."""
    return jnp.concatenate(
        [w1.reshape(-1), b1.reshape(-1), w2.reshape(-1), b2.reshape(-1)]
    ).astype(jnp.float32)


def x_net_forward(x, params, *, tb=1024):
    """x: (B, 3) f32, params: (26,) f32  ->  (B, 1) f32.

    tb: batch tile width (multiple of 128); sweep 1024..8192 for large B.
    """
    B = x.shape[0]
    xt = jnp.transpose(x)                           # (3, B): batch on the lane axis
    b_pad = pl.cdiv(B, tb) * tb
    if b_pad != B:
        xt = jnp.pad(xt, ((0, 0), (0, b_pad - B)))  # padded columns are discarded below

    out = pl.pallas_call(
        xnet_kernel,
        out_shape=jax.ShapeDtypeStruct((1, b_pad), jnp.float32),
        grid=(b_pad // tb,),
        in_specs=[
            pl.BlockSpec(memory_space=pltpu.MemorySpace.SMEM),  # params: whole array, SMEM
            pl.BlockSpec((3, tb), lambda i: (0, i)),            # x batch tile
        ],
        out_specs=pl.BlockSpec((1, tb), lambda i: (0, i)),      # lane-dense output tile
        compiler_params=pltpu.CompilerParams(
            dimension_semantics=("parallel",),                  # megacore split on v7x
        ),
    )(params, xt)

    return out[0, :B].reshape(B, 1)


def init_params(key):
    """torch.nn.Linear default init: U(-1/sqrt(fan_in), 1/sqrt(fan_in))."""
    k1, k2, k3, k4 = jax.random.split(key, 4)
    bound1 = 1.0 / jnp.sqrt(3.0)
    bound2 = 1.0 / jnp.sqrt(5.0)
    w1 = jax.random.uniform(k1, (3, 5), jnp.float32, -bound1, bound1)  # (in, out)
    b1 = jax.random.uniform(k2, (5,), jnp.float32, -bound1, bound1)
    w2 = jax.random.uniform(k3, (5, 1), jnp.float32, -bound2, bound2)
    b2 = jax.random.uniform(k4, (1,), jnp.float32, -bound2, bound2)
    return w1, b1, w2, b2


def reference(x, w1, b1, w2, b2):
    return jnp.maximum(x @ w1 + b1[None, :], 0.0) @ w2 + b2[None, :]


if __name__ == "__main__":
    key = jax.random.PRNGKey(0)
    kx, kp, kx2 = jax.random.split(key, 3)

    w1, b1, w2, b2 = init_params(kp)
    params = pack_params(w1, b1, w2, b2)

    # Small batch matching the original module usage.
    B = 8
    x = jax.random.normal(kx, (B, 3), jnp.float32)
    y = jax.block_until_ready(x_net_forward(x, params))
    assert y.shape == (B, 1)
    assert jnp.allclose(y, reference(x, w1, b1, w2, b2), atol=1e-5), "mismatch (B=8)"

    # Non-multiple-of-tile batch to exercise padding + a multi-step grid.
    B2 = 1000
    x2 = jax.random.normal(kx2, (B2, 3), jnp.float32)
    y2 = jax.block_until_ready(x_net_forward(x2, params, tb=256))
    assert y2.shape == (B2, 1)
    assert jnp.allclose(y2, reference(x2, w1, b1, w2, b2), atol=1e-5), "mismatch (B=1000)"

    print("KERNEL_OK")
</pallas_src>

<mosaic_0001>
module attributes {stable_mosaic.version = 11 : i64} {
  func.func @xnet_kernel(%arg0: i32, %arg1: memref<26xf32, #tpu.memory_space<smem>>, %arg2: memref<3x1024xf32, #tpu.memory_space<vmem>>, %arg3: memref<1x1024xf32, #tpu.memory_space<vmem>>) attributes {dimension_semantics = [#tpu.dimension_semantics<parallel>], iteration_bounds = array<i64: 1>, scalar_prefetch = 0 : i64, scratch_operands = 0 : i64, tpu.core_type = #tpu.core_type<tc>, window_params = [{transform_indices = @transform_0, window_bounds = array<i64: 26>}, {transform_indices = @transform_1, window_bounds = array<i64: 3, 1024>}, {transform_indices = @transform_2, window_bounds = array<i64: 1, 1024>}]} {
    %c0 = arith.constant 0 : index
    %c0_0 = arith.constant 0 : index
    %0 = vector.load %arg2[%c0, %c0_0] : memref<3x1024xf32, #tpu.memory_space<vmem>>, vector<1x1024xf32>
    %c1 = arith.constant 1 : index
    %c0_1 = arith.constant 0 : index
    %1 = vector.load %arg2[%c1, %c0_1] : memref<3x1024xf32, #tpu.memory_space<vmem>>, vector<1x1024xf32>
    %c2 = arith.constant 2 : index
    %c0_2 = arith.constant 0 : index
    %2 = vector.load %arg2[%c2, %c0_2] : memref<3x1024xf32, #tpu.memory_space<vmem>>, vector<1x1024xf32>
    %c0_3 = arith.constant 0 : index
    %3 = memref.load %arg1[%c0_3] : memref<26xf32, #tpu.memory_space<smem>>
    %4 = vector.broadcast %3 : f32 to vector<1x1024xf32>
    %5 = arith.mulf %4, %0 : vector<1x1024xf32>
    %c5 = arith.constant 5 : index
    %6 = memref.load %arg1[%c5] : memref<26xf32, #tpu.memory_space<smem>>
    %7 = vector.broadcast %6 : f32 to vector<1x1024xf32>
    %8 = arith.mulf %7, %1 : vector<1x1024xf32>
    %9 = arith.addf %5, %8 : vector<1x1024xf32>
    %c10 = arith.constant 10 : index
    %10 = memref.load %arg1[%c10] : memref<26xf32, #tpu.memory_space<smem>>
    %11 = vector.broadcast %10 : f32 to vector<1x1024xf32>
    %12 = arith.mulf %11, %2 : vector<1x1024xf32>
    %13 = arith.addf %9, %12 : vector<1x1024xf32>
    %c15 = arith.constant 15 : index
    %14 = memref.load %arg1[%c15] : memref<26xf32, #tpu.memory_space<smem>>
    %15 = vector.broadcast %14 : f32 to vector<1x1024xf32>
    %16 = arith.addf %13, %15 : vector<1x1024xf32>
    %cst = arith.constant 0.000000e+00 : f32
    %17 = vector.broadcast %cst : f32 to vector<1x1024xf32>
    %18 = arith.maximumf %16, %17 : vector<1x1024xf32>
    %c20 = arith.constant 20 : index
    %19 = memref.load %arg1[%c20] : memref<26xf32, #tpu.memory_space<smem>>
    %20 = vector.broadcast %19 : f32 to vector<1x1024xf32>
    %21 = arith.mulf %20, %18 : vector<1x1024xf32>
    %c1_4 = arith.constant 1 : index
    %22 = memref.load %arg1[%c1_4] : memref<26xf32, #tpu.memory_space<smem>>
    %23 = vector.broadcast %22 : f32 to vector<1x1024xf32>
    %24 = arith.mulf %23, %0 : vector<1x1024xf32>
    %c6 = arith.constant 6 : index
    %25 = memref.load %arg1[%c6] : memref<26xf32, #tpu.memory_space<smem>>
    %26 = vector.broadcast %25 : f32 to vector<1x1024xf32>
    %27 = arith.mulf %26, %1 : vector<1x1024xf32>
    %28 = arith.addf %24, %27 : vector<1x1024xf32>
    %c11 = arith.constant 11 : index
    %29 = memref.load %arg1[%c11] : memref<26xf32, #tpu.memory_space<smem>>
    %30 = vector.broadcast %29 : f32 to vector<1x1024xf32>
    %31 = arith.mulf %30, %2 : vector<1x1024xf32>
    %32 = arith.addf %28, %31 : vector<1x1024xf32>
    %c16 = arith.constant 16 : index
    %33 = memref.load %arg1[%c16] : memref<26xf32, #tpu.memory_space<smem>>
    %34 = vector.broadcast %33 : f32 to vector<1x1024xf32>
    %35 = arith.addf %32, %34 : vector<1x1024xf32>
    %cst_5 = arith.constant 0.000000e+00 : f32
    %36 = vector.broadcast %cst_5 : f32 to vector<1x1024xf32>
    %37 = arith.maximumf %35, %36 : vector<1x1024xf32>
    %c21 = arith.constant 21 : index
    %38 = memref.load %arg1[%c21] : memref<26xf32, #tpu.memory_space<smem>>
    %39 = vector.broadcast %38 : f32 to vector<1x1024xf32>
    %40 = arith.mulf %39, %37 : vector<1x1024xf32>
    %41 = arith.addf %21, %40 : vector<1x1024xf32>
    %c2_6 = arith.constant 2 : index
    %42 = memref.load %arg1[%c2_6] : memref<26xf32, #tpu.memory_space<smem>>
    %43 = vector.broadcast %42 : f32 to vector<1x1024xf32>
    %44 = arith.mulf %43, %0 : vector<1x1024xf32>
    %c7 = arith.constant 7 : index
    %45 = memref.load %arg1[%c7] : memref<26xf32, #tpu.memory_space<smem>>
    %46 = vector.broadcast %45 : f32 to vector<1x1024xf32>
    %47 = arith.mulf %46, %1 : vector<1x1024xf32>
    %48 = arith.addf %44, %47 : vector<1x1024xf32>
    %c12 = arith.constant 12 : index
    %49 = memref.load %arg1[%c12] : memref<26xf32, #tpu.memory_space<smem>>
    %50 = vector.broadcast %49 : f32 to vector<1x1024xf32>
    %51 = arith.mulf %50, %2 : vector<1x1024xf32>
    %52 = arith.addf %48, %51 : vector<1x1024xf32>
    %c17 = arith.constant 17 : index
    %53 = memref.load %arg1[%c17] : memref<26xf32, #tpu.memory_space<smem>>
    %54 = vector.broadcast %53 : f32 to vector<1x1024xf32>
    %55 = arith.addf %52, %54 : vector<1x1024xf32>
    %cst_7 = arith.constant 0.000000e+00 : f32
    %56 = vector.broadcast %cst_7 : f32 to vector<1x1024xf32>
    %57 = arith.maximumf %55, %56 : vector<1x1024xf32>
    %c22 = arith.constant 22 : index
    %58 = memref.load %arg1[%c22] : memref<26xf32, #tpu.memory_space<smem>>
    %59 = vector.broadcast %58 : f32 to vector<1x1024xf32>
    %60 = arith.mulf %59, %57 : vector<1x1024xf32>
    %61 = arith.addf %41, %60 : vector<1x1024xf32>
    %c3 = arith.constant 3 : index
    %62 = memref.load %arg1[%c3] : memref<26xf32, #tpu.memory_space<smem>>
    %63 = vector.broadcast %62 : f32 to vector<1x1024xf32>
    %64 = arith.mulf %63, %0 : vector<1x1024xf32>
    %c8 = arith.constant 8 : index
    %65 = memref.load %arg1[%c8] : memref<26xf32, #tpu.memory_space<smem>>
    %66 = vector.broadcast %65 : f32 to vector<1x1024xf32>
    %67 = arith.mulf %66, %1 : vector<1x1024xf32>
    %68 = arith.addf %64, %67 : vector<1x1024xf32>
    %c13 = arith.constant 13 : index
    %69 = memref.load %arg1[%c13] : memref<26xf32, #tpu.memory_space<smem>>
    %70 = vector.broadcast %69 : f32 to vector<1x1024xf32>
    %71 = arith.mulf %70, %2 : vector<1x1024xf32>
    %72 = arith.addf %68, %71 : vector<1x1024xf32>
    %c18 = arith.constant 18 : index
    %73 = memref.load %arg1[%c18] : memref<26xf32, #tpu.memory_space<smem>>
    %74 = vector.broadcast %73 : f32 to vector<1x1024xf32>
    %75 = arith.addf %72, %74 : vector<1x1024xf32>
    %cst_8 = arith.constant 0.000000e+00 : f32
    %76 = vector.broadcast %cst_8 : f32 to vector<1x1024xf32>
    %77 = arith.maximumf %75, %76 : vector<1x1024xf32>
    %c23 = arith.constant 23 : index
    %78 = memref.load %arg1[%c23] : memref<26xf32, #tpu.memory_space<smem>>
    %79 = vector.broadcast %78 : f32 to vector<1x1024xf32>
    %80 = arith.mulf %79, %77 : vector<1x1024xf32>
    %81 = arith.addf %61, %80 : vector<1x1024xf32>
    %c4 = arith.constant 4 : index
    %82 = memref.load %arg1[%c4] : memref<26xf32, #tpu.memory_space<smem>>
    %83 = vector.broadcast %82 : f32 to vector<1x1024xf32>
    %84 = arith.mulf %83, %0 : vector<1x1024xf32>
    %c9 = arith.constant 9 : index
    %85 = memref.load %arg1[%c9] : memref<26xf32, #tpu.memory_space<smem>>
    %86 = vector.broadcast %85 : f32 to vector<1x1024xf32>
    %87 = arith.mulf %86, %1 : vector<1x1024xf32>
    %88 = arith.addf %84, %87 : vector<1x1024xf32>
    %c14 = arith.constant 14 : index
    %89 = memref.load %arg1[%c14] : memref<26xf32, #tpu.memory_space<smem>>
    %90 = vector.broadcast %89 : f32 to vector<1x1024xf32>
    %91 = arith.mulf %90, %2 : vector<1x1024xf32>
    %92 = arith.addf %88, %91 : vector<1x1024xf32>
    %c19 = arith.constant 19 : index
    %93 = memref.load %arg1[%c19] : memref<26xf32, #tpu.memory_space<smem>>
    %94 = vector.broadcast %93 : f32 to vector<1x1024xf32>
    %95 = arith.addf %92, %94 : vector<1x1024xf32>
    %cst_9 = arith.constant 0.000000e+00 : f32
    %96 = vector.broadcast %cst_9 : f32 to vector<1x1024xf32>
    %97 = arith.maximumf %95, %96 : vector<1x1024xf32>
    %c24 = arith.constant 24 : index
    %98 = memref.load %arg1[%c24] : memref<26xf32, #tpu.memory_space<smem>>
    %99 = vector.broadcast %98 : f32 to vector<1x1024xf32>
    %100 = arith.mulf %99, %97 : vector<1x1024xf32>
    %101 = arith.addf %81, %100 : vector<1x1024xf32>
    %c25 = arith.constant 25 : index
    %102 = memref.load %arg1[%c25] : memref<26xf32, #tpu.memory_space<smem>>
    %103 = vector.broadcast %102 : f32 to vector<1x1024xf32>
    %104 = arith.addf %101, %103 : vector<1x1024xf32>
    %c0_10 = arith.constant 0 : index
    %c0_11 = arith.constant 0 : index
    %105 = vector.load %arg3[%c0_10, %c0_11] : memref<1x1024xf32, #tpu.memory_space<vmem>>, vector<1x1024xf32>
    tpu.vector_store %arg3[%c0_10, %c0_11], %104 {strides = array<i32>} : memref<1x1024xf32, #tpu.memory_space<vmem>>, vector<1x1024xf32>,
    return
  }
  func.func @transform_0(%arg0: i32) -> i32 {
    %c0_i32 = arith.constant 0 : i32
    %c0_i32_0 = arith.constant 0 : i32
    return %c0_i32 : i32
  }
  func.func @transform_1(%arg0: i32) -> (i32, i32) {
    %c0_i32 = arith.constant 0 : i32
    %c0_i32_0 = arith.constant 0 : i32
    return %c0_i32, %arg0 : i32, i32
  }
  func.func @transform_2(%arg0: i32) -> (i32, i32) {
    %c0_i32 = arith.constant 0 : i32
    %c0_i32_0 = arith.constant 0 : i32
    return %c0_i32, %arg0 : i32, i32
  }
}

</mosaic_0001>

<llo_original>
// kernel: tpu_custom_call.1
$region0: #{tpu_custom_call.1}
  #allocation0 [shape = 'u32[]', space=smem, size = 0x4, offset = 0x4, fixed_abs, tag = 'smem constant byte address 0x4 - core index']
  #allocation1 [shape = 'u32[144,128]{1,0:T(1,128)}', space=vmem, size = 0x12000, scoped, tag = 'internal scratch']
  %s0 = inlined_call_operand.hbm [shape: f32[26], index: 0, kind: input, shape index: {}]
  %s1 = inlined_call_operand.hbm [shape: f32[3,1024], index: 1, kind: input, shape index: {}]
  %s2 = inlined_call_operand.hbm [shape: f32[1,1024], index: 2, kind: output, shape index: {}]
  %s3 = sld [smem:[#allocation0]]
  $region26: #{tpu_custom_call.1} parent=0
    _
  %s5 = ssub.s32 1, %s3
  %s6 = scalar_select 0, %s5, %s3
  $region1: #{tpu_custom_call.1} parent=0
    #allocation2 [shape = 'u8[512]{0}', space=smem, size = 0x200, scoped, tag = 'input window, operand 0, single buffered']
    #allocation3 [shape = 's32[1]{0}', space=sflag, size = 0x4, scoped, tag = 'scoped memory for tpu_custom_call.1']
    #allocation4 [shape = 's32[1]{0}', space=sflag, size = 0x4, scoped, tag = 'scoped memory for tpu_custom_call.1']
    #allocation5 [shape = 's32[1]{0}', space=sflag, size = 0x4, scoped, tag = 'scoped memory for tpu_custom_call.1']
    #allocation6 [shape = 'u8[16384]{0}', space=vmem, size = 0x4000, scoped, tag = 'input window, operand 1, single buffered']
    #allocation7 [shape = 'u8[4096]{0}', space=vmem, size = 0x1000, scoped, tag = 'output window, operand 0, single buffered']
    %7 = vsyncpa [#allocation5], 0
    %8 = vsyncpa [#allocation3], 0
    %9 = vsyncpa [#allocation4], 0
    // Predicated region
    $region2: #{tpu_custom_call.1} parent=1 // pred_check
      _
    $region3: #{tpu_custom_call.1} parent=1 // pred_check_branch
      %11 = sbr.rel (0) target = $region5
    $region4: #{tpu_custom_call.1} parent=1 // pred_region
      %s13 = ssub.s32 16, 16
      %14 = vsyncadd [#allocation5], %s13
      %17 = dma.hbm_to_smem %s0, 16, [#allocation2], [#allocation5]
    $region5: #{tpu_custom_call.1} parent=1 // pred_fallthru
      _
    // Predicated region
    $region6: #{tpu_custom_call.1} parent=1 // pred_check
      _
    $region7: #{tpu_custom_call.1} parent=1 // pred_check_branch
      %19 = sbr.rel (0) target = $region9
    $region8: #{tpu_custom_call.1} parent=1 // pred_region
      %s21 = ssub.s32 512, 512
      %22 = vsyncadd [#allocation3], %s21
      %s24 = sshll.u32 [#allocation6], 4
      %s25 = int_to_ptr.vmem [resolvable:$true] %s24
      %27 = dma.hbm_to_vmem [thread:$0]  %s1, 512, %s25, [#allocation3]
    $region9: #{tpu_custom_call.1} parent=1 // pred_fallthru
      _
    // Predicated region
    $region10: #{tpu_custom_call.1} parent=1 // pred_check
      _
    $region11: #{tpu_custom_call.1} parent=1 // pred_check_branch
      %29 = sbr.rel (0) target = $region13
    $region12: #{tpu_custom_call.1} parent=1 // pred_region
      %30 = dma.done [#allocation5], 16
    $region13: #{tpu_custom_call.1} parent=1 // pred_fallthru
      _
    // Predicated region
    $region14: #{tpu_custom_call.1} parent=1 // pred_check
      _
    $region15: #{tpu_custom_call.1} parent=1 // pred_check_branch
      %32 = sbr.rel (0) target = $region17
    $region16: #{tpu_custom_call.1} parent=1 // pred_region
      %33 = dma.done [#allocation3], 512
    $region17: #{tpu_custom_call.1} parent=1 // pred_fallthru
      _
    %34 = sfence
    %v35 = vld [vmem:[#allocation6] ss:$4 sm:$0xff]
    %s36 = scalar_lea.vmem [#allocation6], 1
    %v37 = vld [vmem:[%s36] ss:$4 sm:$0xff]
    %s38 = scalar_lea.vmem [#allocation6], 2
    %v39 = vld [vmem:[%s38] ss:$4 sm:$0xff]
    %s40 = sld [smem:[#allocation2]]
    %v41 = vstv %s40
    %v42 = vmul.f32 %v41, %v35
    %s43 = sld [smem:[#allocation2 + $0x5]]
    %v44 = vstv %s43
    %v45 = vmul.f32 %v44, %v37
    %v46 = vadd.f32 %v42, %v45
    %s47 = sld [smem:[#allocation2 + $0xa]]
    %v48 = vstv %s47
    %v49 = vmul.f32 %v48, %v39
    %v50 = vadd.f32 %v46, %v49
    %s51 = sld [smem:[#allocation2 + $0xf]]
    %v52 = vstv %s51
    %v53 = vadd.f32 %v50, %v52
    %v54 = vmax.f32 %v53, 0.0
    %s55 = sld [smem:[#allocation2 + $0x14]]
    %v56 = vstv %s55
    %v57 = vmul.f32 %v56, %v54
    %s58 = sld [smem:[#allocation2 + $0x1]]
    %v59 = vstv %s58
    %v60 = vmul.f32 %v59, %v35
    %s61 = sld [smem:[#allocation2 + $0x6]]
    %v62 = vstv %s61
    %v63 = vmul.f32 %v62, %v37
    %v64 = vadd.f32 %v60, %v63
    %s65 = sld [smem:[#allocation2 + $0xb]]
    %v66 = vstv %s65
    %v67 = vmul.f32 %v66, %v39
    %v68 = vadd.f32 %v64, %v67
    %s69 = sld [smem:[#allocation2 + $0x10]]
    %v70 = vstv %s69
    %v71 = vadd.f32 %v68, %v70
    %v72 = vmax.f32 %v71, 0.0
    %s73 = sld [smem:[#allocation2 + $0x15]]
    %v74 = vstv %s73
    %v75 = vmul.f32 %v74, %v72
    %v76 = vadd.f32 %v57, %v75
    %s77 = sld [smem:[#allocation2 + $0x2]]
    %v78 = vstv %s77
    %v79 = vmul.f32 %v78, %v35
    %s80 = sld [smem:[#allocation2 + $0x7]]
    %v81 = vstv %s80
    %v82 = vmul.f32 %v81, %v37
    %v83 = vadd.f32 %v79, %v82
    %s84 = sld [smem:[#allocation2 + $0xc]]
    %v85 = vstv %s84
    %v86 = vmul.f32 %v85, %v39
    %v87 = vadd.f32 %v83, %v86
    %s88 = sld [smem:[#allocation2 + $0x11]]
    %v89 = vstv %s88
    %v90 = vadd.f32 %v87, %v89
    %v91 = vmax.f32 %v90, 0.0
    %s92 = sld [smem:[#allocation2 + $0x16]]
    %v93 = vstv %s92
    %v94 = vmul.f32 %v93, %v91
    %v95 = vadd.f32 %v76, %v94
    %s96 = sld [smem:[#allocation2 + $0x3]]
    %v97 = vstv %s96
    %v98 = vmul.f32 %v97, %v35
    %s99 = sld [smem:[#allocation2 + $0x8]]
    %v100 = vstv %s99
    %v101 = vmul.f32 %v100, %v37
    %v102 = vadd.f32 %v98, %v101
    %s103 = sld [smem:[#allocation2 + $0xd]]
    %v104 = vstv %s103
    %v105 = vmul.f32 %v104, %v39
    %v106 = vadd.f32 %v102, %v105
    %s107 = sld [smem:[#allocation2 + $0x12]]
    %v108 = vstv %s107
    %v109 = vadd.f32 %v106, %v108
    %v110 = vmax.f32 %v109, 0.0
    %s111 = sld [smem:[#allocation2 + $0x17]]
    %v112 = vstv %s111
    %v113 = vmul.f32 %v112, %v110
    %v114 = vadd.f32 %v95, %v113
    %s115 = sld [smem:[#allocation2 + $0x4]]
    %v116 = vstv %s115
    %v117 = vmul.f32 %v116, %v35
    %s118 = sld [smem:[#allocation2 + $0x9]]
    %v119 = vstv %s118
    %v120 = vmul.f32 %v119, %v37
    %v121 = vadd.f32 %v117, %v120
    %s122 = sld [smem:[#allocation2 + $0xe]]
    %v123 = vstv %s122
    %v124 = vmul.f32 %v123, %v39
    %v125 = vadd.f32 %v121, %v124
    %s126 = sld [smem:[#allocation2 + $0x13]]
    %v127 = vstv %s126
    %v128 = vadd.f32 %v125, %v127
    %v129 = vmax.f32 %v128, 0.0
    %s130 = sld [smem:[#allocation2 + $0x18]]
    %v131 = vstv %s130
    %v132 = vmul.f32 %v131, %v129
    %v133 = vadd.f32 %v114, %v132
    %s134 = sld [smem:[#allocation2 + $0x19]]
    %v135 = vstv %s134
    %v136 = vadd.f32 %v133, %v135
    %137 = vst [vmem:[#allocation7] sm:$0xff] %v136
    // Predicated region
    $region18: #{tpu_custom_call.1} parent=1 // pred_check
      _
    $region19: #{tpu_custom_call.1} parent=1 // pred_check_branch
      %139 = sbr.rel (0) target = $region21
    $region20: #{tpu_custom_call.1} parent=1 // pred_region
      %s141 = ssub.s32 128, 128
      %142 = vsyncadd [#allocation4], %s141
      %s144 = sshll.u32 [#allocation7], 4
      %s145 = int_to_ptr.vmem [resolvable:$true] %s144
      %147 = dma.vmem_to_hbm [thread:$0]  %s145, 128, %s2, [#allocation4]
    $region21: #{tpu_custom_call.1} parent=1 // pred_fallthru
      _
    // Predicated region
    $region22: #{tpu_custom_call.1} parent=1 // pred_check
      _
    $region23: #{tpu_custom_call.1} parent=1 // pred_check_branch
      %149 = sbr.rel (0) target = $region25
    $region24: #{tpu_custom_call.1} parent=1 // pred_region
      %150 = dma.done [#allocation4], 128
    $region25: #{tpu_custom_call.1} parent=1 // pred_fallthru
      _
    %151 = vsyncpa [#allocation3], 1
    %152 = vsyncpa [#allocation4], 1
    %153 = vsyncpa [#allocation5], 1

</llo_original>
